<compile_context>
chip_gen: v5e
topology: v5e:2x2
jax: 0.10.0
libtpu: 0.0.40
codegen_flags: <defaults>
</compile_context>

<pallas_src>
import jax
import jax.numpy as jnp
from jax.experimental import pallas as pl
from jax.experimental.pallas import tpu as pltpu


def _round_up(x, m):
    return ((x + m - 1) // m) * m


def _round_down(x, m):
    return (x // m) * m


def mlp_kernel_t(x_ref, w1_ref, b1_ref, w2_ref, b2_ref, o_ref):
    """Transposed MLP: o_t = W2 @ relu(W1 @ x_t + b1) + b2 (batch on lanes)."""
    # Hidden layer on the MXU with f32 accumulation; bias broadcast + ReLU on
    # the VPU at full 128-lane occupancy.
    h = jnp.dot(w1_ref[...], x_ref[...], preferred_element_type=jnp.float32)
    h = jnp.maximum(h + b1_ref[...], 0.0)
    # Output layer; store is lane-dense (last dim = batch tile).
    out = jnp.dot(w2_ref[...], h, preferred_element_type=jnp.float32)
    o_ref[...] = (out + b2_ref[...]).astype(o_ref.dtype)


def net_forward_t(x_t, w1, b1, w2, b2, *, max_vmem_bytes=8 * 1024 * 1024):
    """Lane-dense forward pass.

    x_t: [obs_size, B] f32  ->  [n_actions, B] f32.
    w1: [hidden, obs], b1: [hidden], w2: [n_actions, hidden], b2: [n_actions]
    (PyTorch nn.Linear native layouts, used without transposing).
    """
    obs_size, B = x_t.shape
    hidden_size = w1.shape[0]
    n_actions = w2.shape[0]

    # Biases as column vectors so they broadcast over the lane (batch) axis.
    b1_col = b1.reshape(hidden_size, 1)
    b2_col = b2.reshape(n_actions, 1)

    itemsize = 4  # f32
    weight_bytes = itemsize * (w1.size + w2.size + hidden_size + n_actions)
    flops = 2 * B * hidden_size * (obs_size + n_actions)
    bytes_accessed = weight_bytes + itemsize * B * (obs_size + n_actions)
    cost = pl.CostEstimate(flops=flops, transcendentals=0,
                           bytes_accessed=bytes_accessed)

    # ----- Path selection (budget-based, not a hard-coded batch threshold) ---
    # Single-shot footprint: x_t + h + o_t + weights, all resident at once.
    single_shot_bytes = weight_bytes + B * itemsize * (obs_size + hidden_size + n_actions)
    if single_shot_bytes <= max_vmem_bytes:
        # No grid at all: every operand is one full-array VMEM block.  No
        # pipelining machinery, no double buffers, no padding/slicing ops.
        return pl.pallas_call(
            mlp_kernel_t,
            out_shape=jax.ShapeDtypeStruct((n_actions, B), jnp.float32),
            in_specs=[pl.BlockSpec(memory_space=pltpu.MemorySpace.VMEM)] * 5,
            out_specs=pl.BlockSpec(memory_space=pltpu.MemorySpace.VMEM),
            cost_estimate=cost,
        )(x_t, w1, b1_col, w2, b2_col)

    # ----- Grid path: only for batches too large for single-shot VMEM --------
    # Tile the batch (lane) axis with the largest tile the budget allows
    # (double-buffered x/out tiles + h scratch), capped at ceil(B/2) so the
    # grid is ideally exactly 2 big tiles -- one per TensorCore on v7x.
    # Weights/biases use constant index_maps -> fetched into VMEM once.
    tiled_row_bytes = itemsize * (2 * obs_size + hidden_size + 2 * n_actions)
    tile_cap = _round_down(max(0, max_vmem_bytes - weight_bytes) // tiled_row_bytes, 128)
    tile_b = max(128, min(_round_up(pl.cdiv(B, 2), 128), tile_cap))
    n_tiles = pl.cdiv(B, tile_b)  # ragged last block handled by Pallas (no jnp.pad)

    return pl.pallas_call(
        mlp_kernel_t,
        out_shape=jax.ShapeDtypeStruct((n_actions, B), jnp.float32),
        grid=(n_tiles,),
        in_specs=[
            pl.BlockSpec((obs_size, tile_b), lambda i: (0, i)),        # x tile per step
            pl.BlockSpec((hidden_size, obs_size), lambda i: (0, 0)),   # VMEM-resident
            pl.BlockSpec((hidden_size, 1), lambda i: (0, 0)),          # VMEM-resident
            pl.BlockSpec((n_actions, hidden_size), lambda i: (0, 0)),  # VMEM-resident
            pl.BlockSpec((n_actions, 1), lambda i: (0, 0)),            # VMEM-resident
        ],
        out_specs=pl.BlockSpec((n_actions, tile_b), lambda i: (0, i)),
        compiler_params=pltpu.CompilerParams(
            dimension_semantics=("parallel",)),  # v7x: one big tile per TC
        cost_estimate=cost,
    )(x_t, w1, b1_col, w2, b2_col)


def net_forward(x, w1, b1, w2, b2, *, max_vmem_bytes=8 * 1024 * 1024):
    """PyTorch-interface forward: x [B, obs_size] f32 -> [B, n_actions] f32.

    The x.T / out.T here are layout plumbing for the lane-dense kernel; a real
    pipeline would keep activations feature-major and call net_forward_t.
    """
    out_t = net_forward_t(x.T, w1, b1, w2, b2, max_vmem_bytes=max_vmem_bytes)
    return out_t.T


def reference_forward(x, w1, b1, w2, b2):
    h = jnp.maximum(x @ w1.T + b1, 0.0)
    return h @ w2.T + b2


if __name__ == "__main__":
    # FrozenLake sizes from 02_frozenlake_naive.py: obs=16 (one-hot states),
    # hidden=128, actions=4.
    OBS, HID, ACT = 16, 128, 4

    key = jax.random.PRNGKey(0)
    k_x, k_w1, k_b1, k_w2, k_b2, k_xb = jax.random.split(key, 6)

    # PyTorch-native [out_features, in_features] weight layouts.
    w1 = jax.random.normal(k_w1, (HID, OBS), dtype=jnp.float32) * 0.1
    b1 = jax.random.normal(k_b1, (HID,), dtype=jnp.float32) * 0.1
    w2 = jax.random.normal(k_w2, (ACT, HID), dtype=jnp.float32) * 0.1
    b2 = jax.random.normal(k_b2, (ACT,), dtype=jnp.float32) * 0.1

    # 1) Small batch -> single-shot no-grid path (the common case; the budget
    #    keeps this path valid up to tens of thousands of rows).
    B_small = 8
    x_small = jax.random.normal(k_x, (B_small, OBS), dtype=jnp.float32)
    out_small = jax.block_until_ready(net_forward(x_small, w1, b1, w2, b2))
    ref_small = reference_forward(x_small, w1, b1, w2, b2)
    assert out_small.shape == (B_small, ACT)
    assert jnp.allclose(out_small, ref_small, atol=1e-5, rtol=1e-5), \
        "single-shot path mismatch vs reference"

    # 2) Grid path, exercised at a small size by forcing a tiny VMEM budget;
    #    B is deliberately not a multiple of the tile so the ragged last block
    #    (no external pad / slice) is covered.
    B_big = 1000
    x_big = jax.random.normal(k_xb, (B_big, OBS), dtype=jnp.float32)
    out_big = jax.block_until_ready(
        net_forward(x_big, w1, b1, w2, b2, max_vmem_bytes=256 * 1024))
    ref_big = reference_forward(x_big, w1, b1, w2, b2)
    assert out_big.shape == (B_big, ACT)
    assert jnp.allclose(out_big, ref_big, atol=1e-5, rtol=1e-5), \
        "grid path mismatch vs reference"

    print("KERNEL_OK")
</pallas_src>

<mosaic_0001>
module attributes {stable_mosaic.version = 11 : i64} {
  func.func @mlp_kernel_t(%arg0: memref<16x8xf32, #tpu.memory_space<vmem>>, %arg1: memref<128x16xf32, #tpu.memory_space<vmem>>, %arg2: memref<128x1xf32, #tpu.memory_space<vmem>>, %arg3: memref<4x128xf32, #tpu.memory_space<vmem>>, %arg4: memref<4x1xf32, #tpu.memory_space<vmem>>, %arg5: memref<4x8xf32, #tpu.memory_space<vmem>>) attributes {dimension_semantics = [], scalar_prefetch = 0 : i64, scratch_operands = 0 : i64, tpu.core_type = #tpu.core_type<tc>} {
    %c0 = arith.constant 0 : index
    %c0_0 = arith.constant 0 : index
    %0 = vector.load %arg1[%c0, %c0_0] : memref<128x16xf32, #tpu.memory_space<vmem>>, vector<128x16xf32>
    %c0_1 = arith.constant 0 : index
    %c0_2 = arith.constant 0 : index
    %1 = vector.load %arg0[%c0_1, %c0_2] : memref<16x8xf32, #tpu.memory_space<vmem>>, vector<16x8xf32>
    %cst = arith.constant dense<0.000000e+00> : vector<128x8xf32>
    %2 = tpu.matmul %0, %1, %cst {dimension_numbers = #tpu.dot_dimension_numbers<[1], [0], [0], [1], [0, 0, 1, 1], [], []>} : vector<128x16xf32>, vector<16x8xf32>, vector<128x8xf32> -> vector<128x8xf32>
    %c0_3 = arith.constant 0 : index
    %c0_4 = arith.constant 0 : index
    %3 = vector.load %arg2[%c0_3, %c0_4] : memref<128x1xf32, #tpu.memory_space<vmem>>, vector<128x1xf32>
    %4 = vector.broadcast %3 : vector<128x1xf32> to vector<128x8xf32>
    %5 = arith.addf %2, %4 : vector<128x8xf32>
    %cst_5 = arith.constant 0.000000e+00 : f32
    %6 = vector.broadcast %cst_5 : f32 to vector<128x8xf32>
    %7 = arith.maximumf %5, %6 : vector<128x8xf32>
    %c0_6 = arith.constant 0 : index
    %c0_7 = arith.constant 0 : index
    %8 = vector.load %arg3[%c0_6, %c0_7] : memref<4x128xf32, #tpu.memory_space<vmem>>, vector<4x128xf32>
    %cst_8 = arith.constant dense<0.000000e+00> : vector<4x8xf32>
    %9 = tpu.matmul %8, %7, %cst_8 {dimension_numbers = #tpu.dot_dimension_numbers<[1], [0], [0], [1], [0, 0, 1, 1], [], []>} : vector<4x128xf32>, vector<128x8xf32>, vector<4x8xf32> -> vector<4x8xf32>
    %c0_9 = arith.constant 0 : index
    %c0_10 = arith.constant 0 : index
    %10 = vector.load %arg4[%c0_9, %c0_10] : memref<4x1xf32, #tpu.memory_space<vmem>>, vector<4x1xf32>
    %11 = vector.broadcast %10 : vector<4x1xf32> to vector<4x8xf32>
    %12 = arith.addf %9, %11 : vector<4x8xf32>
    %c0_11 = arith.constant 0 : index
    %c0_12 = arith.constant 0 : index
    %13 = vector.load %arg5[%c0_11, %c0_12] : memref<4x8xf32, #tpu.memory_space<vmem>>, vector<4x8xf32>
    tpu.vector_store %arg5[%c0_11, %c0_12], %12 {strides = array<i32>} : memref<4x8xf32, #tpu.memory_space<vmem>>, vector<4x8xf32>,
    return
  }
}

</mosaic_0001>

<llo_original>
// kernel: tpu_custom_call.1
$region0: #{tpu_custom_call.1}
  #allocation0 [shape = 'u32[]', space=smem, size = 0x4, offset = 0x4, fixed_abs, tag = 'smem constant byte address 0x4 - core index']
  #allocation1 [shape = 'u32[72,128]{1,0:T(1,128)}', space=vmem, size = 0x9000, scoped, tag = 'internal scratch']
  %s0 = inlined_call_operand.vmem [shape: f32[16,8], index: 0, kind: input, shape index: {}]
  %s1 = inlined_call_operand.vmem [shape: f32[128,16], index: 1, kind: input, shape index: {}]
  %s2 = inlined_call_operand.vmem [shape: f32[128,1], index: 2, kind: input, shape index: {}]
  %s3 = inlined_call_operand.vmem [shape: f32[4,128], index: 3, kind: input, shape index: {}]
  %s4 = inlined_call_operand.vmem [shape: f32[4,1], index: 4, kind: input, shape index: {}]
  %s5 = inlined_call_operand.hbm [shape: f32[4,8], index: 5, kind: output, shape index: {}]
  %s6 = sld [smem:[#allocation0]]
  $region30: #{tpu_custom_call.1} parent=0
    _
  %s8 = ssub.s32 1, %s6
  %s9 = scalar_select 0, %s8, %s6
  $region1: #{tpu_custom_call.1} parent=0
    #allocation2 [shape = 'u8[2048]{0}', space=vmem, size = 0x800, scoped, tag = 'output window, operand 0, single buffered']
    #allocation3 [shape = 's32[1]{0}', space=sflag, size = 0x4, scoped, tag = 'scoped memory for tpu_custom_call.1']
    %10 = vsyncpa [#allocation3], 0
    // Predicated region
    $region2: #{tpu_custom_call.1} parent=1 // pred_check
      _
    $region3: #{tpu_custom_call.1} parent=1 // pred_check_branch
      %12 = sbr.rel (0) target = $region5
    $region4: #{tpu_custom_call.1} parent=1 // pred_region
      _
    $region5: #{tpu_custom_call.1} parent=1 // pred_fallthru
      _
    // Predicated region
    $region6: #{tpu_custom_call.1} parent=1 // pred_check
      _
    $region7: #{tpu_custom_call.1} parent=1 // pred_check_branch
      %14 = sbr.rel (0) target = $region9
    $region8: #{tpu_custom_call.1} parent=1 // pred_region
      _
    $region9: #{tpu_custom_call.1} parent=1 // pred_fallthru
      _
    // Predicated region
    $region10: #{tpu_custom_call.1} parent=1 // pred_check
      _
    $region11: #{tpu_custom_call.1} parent=1 // pred_check_branch
      %16 = sbr.rel (0) target = $region13
    $region12: #{tpu_custom_call.1} parent=1 // pred_region
      _
    $region13: #{tpu_custom_call.1} parent=1 // pred_fallthru
      _
    // Predicated region
    $region14: #{tpu_custom_call.1} parent=1 // pred_check
      _
    $region15: #{tpu_custom_call.1} parent=1 // pred_check_branch
      %18 = sbr.rel (0) target = $region17
    $region16: #{tpu_custom_call.1} parent=1 // pred_region
      _
    $region17: #{tpu_custom_call.1} parent=1 // pred_fallthru
      _
    // Predicated region
    $region18: #{tpu_custom_call.1} parent=1 // pred_check
      _
    $region19: #{tpu_custom_call.1} parent=1 // pred_check_branch
      %20 = sbr.rel (0) target = $region21
    $region20: #{tpu_custom_call.1} parent=1 // pred_region
      _
    $region21: #{tpu_custom_call.1} parent=1 // pred_fallthru
      _
    %v21 = vld [vmem:[%s1] sm:$0xff]
    %v22 = vld [vmem:[%s1 + $0x8] sm:$0xff]
    %v23 = vld [vmem:[%s1 + $0x10] sm:$0xff]
    %v24 = vld [vmem:[%s1 + $0x18] sm:$0xff]
    %v25 = vld [vmem:[%s1 + $0x20] sm:$0xff]
    %v26 = vld [vmem:[%s1 + $0x28] sm:$0xff]
    %v27 = vld [vmem:[%s1 + $0x30] sm:$0xff]
    %v28 = vld [vmem:[%s1 + $0x38] sm:$0xff]
    %v29 = vld [vmem:[%s1 + $0x40] sm:$0xff]
    %v30 = vld [vmem:[%s1 + $0x48] sm:$0xff]
    %v31 = vld [vmem:[%s1 + $0x50] sm:$0xff]
    %v32 = vld [vmem:[%s1 + $0x58] sm:$0xff]
    %v33 = vld [vmem:[%s1 + $0x60] sm:$0xff]
    %v34 = vld [vmem:[%s1 + $0x68] sm:$0xff]
    %v35 = vld [vmem:[%s1 + $0x70] sm:$0xff]
    %v36 = vld [vmem:[%s1 + $0x78] sm:$0xff]
    %v37 = vld [vmem:[%s0] sm:$0xff]
    %v38 = vld [vmem:[%s0 + $0x8] sm:$0xff]
    %v39 = vld [vmem:[%s2] sm:$0xff]
    %v40 = vld [vmem:[%s2 + $0x8] sm:$0xff]
    %v41 = vld [vmem:[%s2 + $0x10] sm:$0xff]
    %v42 = vld [vmem:[%s2 + $0x18] sm:$0xff]
    %v43 = vld [vmem:[%s2 + $0x20] sm:$0xff]
    %v44 = vld [vmem:[%s2 + $0x28] sm:$0xff]
    %v45 = vld [vmem:[%s2 + $0x30] sm:$0xff]
    %v46 = vld [vmem:[%s2 + $0x38] sm:$0xff]
    %v47 = vld [vmem:[%s2 + $0x40] sm:$0xff]
    %v48 = vld [vmem:[%s2 + $0x48] sm:$0xff]
    %v49 = vld [vmem:[%s2 + $0x50] sm:$0xff]
    %v50 = vld [vmem:[%s2 + $0x58] sm:$0xff]
    %v51 = vld [vmem:[%s2 + $0x60] sm:$0xff]
    %v52 = vld [vmem:[%s2 + $0x68] sm:$0xff]
    %v53 = vld [vmem:[%s2 + $0x70] sm:$0xff]
    %v54 = vld [vmem:[%s2 + $0x78] sm:$0xff]
    %56 = vset.pattern.permute.xlu0 0
    %57 = vperm.xlu0 %56, %v39
    %v58 = vpop.permute.xlu0 %57
    %61 = vset.pattern.permute.xlu0 0
    %62 = vperm.xlu0 %61, %v40
    %v63 = vpop.permute.xlu0 %62
    %66 = vset.pattern.permute.xlu0 0
    %67 = vperm.xlu0 %66, %v41
    %v68 = vpop.permute.xlu0 %67
    %71 = vset.pattern.permute.xlu0 0
    %72 = vperm.xlu0 %71, %v42
    %v73 = vpop.permute.xlu0 %72
    %76 = vset.pattern.permute.xlu0 0
    %77 = vperm.xlu0 %76, %v43
    %v78 = vpop.permute.xlu0 %77
    %81 = vset.pattern.permute.xlu0 0
    %82 = vperm.xlu0 %81, %v44
    %v83 = vpop.permute.xlu0 %82
    %86 = vset.pattern.permute.xlu0 0
    %87 = vperm.xlu0 %86, %v45
    %v88 = vpop.permute.xlu0 %87
    %91 = vset.pattern.permute.xlu0 0
    %92 = vperm.xlu0 %91, %v46
    %v93 = vpop.permute.xlu0 %92
    %96 = vset.pattern.permute.xlu0 0
    %97 = vperm.xlu0 %96, %v47
    %v98 = vpop.permute.xlu0 %97
    %101 = vset.pattern.permute.xlu0 0
    %102 = vperm.xlu0 %101, %v48
    %v103 = vpop.permute.xlu0 %102
    %106 = vset.pattern.permute.xlu0 0
    %107 = vperm.xlu0 %106, %v49
    %v108 = vpop.permute.xlu0 %107
    %111 = vset.pattern.permute.xlu0 0
    %112 = vperm.xlu0 %111, %v50
    %v113 = vpop.permute.xlu0 %112
    %116 = vset.pattern.permute.xlu0 0
    %117 = vperm.xlu0 %116, %v51
    %v118 = vpop.permute.xlu0 %117
    %121 = vset.pattern.permute.xlu0 0
    %122 = vperm.xlu0 %121, %v52
    %v123 = vpop.permute.xlu0 %122
    %126 = vset.pattern.permute.xlu0 0
    %127 = vperm.xlu0 %126, %v53
    %v128 = vpop.permute.xlu0 %127
    %131 = vset.pattern.permute.xlu0 0
    %132 = vperm.xlu0 %131, %v54
    %v133 = vpop.permute.xlu0 %132
    %vm135 = vcmask 130048
    %v137 = vsel %vm135, %v21, 0
    %v140 = vsel %vm135, %v22, 0
    %v143 = vsel %vm135, %v23, 0
    %v146 = vsel %vm135, %v24, 0
    %v149 = vsel %vm135, %v25, 0
    %v152 = vsel %vm135, %v26, 0
    %v155 = vsel %vm135, %v27, 0
    %v158 = vsel %vm135, %v28, 0
    %v161 = vsel %vm135, %v29, 0
    %v164 = vsel %vm135, %v30, 0
    %v167 = vsel %vm135, %v31, 0
    %v170 = vsel %vm135, %v32, 0
    %v173 = vsel %vm135, %v33, 0
    %v176 = vsel %vm135, %v34, 0
    %v179 = vsel %vm135, %v35, 0
    %v182 = vsel %vm135, %v36, 0
    %184 = vmatpush.msra.mxu0 0.0
    %185 = vmatpush.msra.mxu0 0.0
    %186 = vmatpush.msra.mxu0 0.0
    %187 = vmatpush.msra.mxu0 0.0
    %188 = vmatpush.msra.mxu0 0.0
    %189 = vmatpush.msra.mxu0 0.0
    %190 = vmatpush.msra.mxu0 0.0
    %191 = vmatpush.msra.mxu0 0.0
    %192 = vmatpush.msra.mxu0 0.0
    %193 = vmatpush.msra.mxu0 0.0
    %194 = vmatpush.msra.mxu0 0.0
    %195 = vmatpush.msra.mxu0 0.0
    %196 = vmatpush.msra.mxu0 0.0
    %197 = vmatpush.msra.mxu0 0.0
    %198 = vmatpush.msra.mxu0 %v38
    %199 = vmatpush.msra.mxu0 %v37
    %200 = vmatmul.f32.gmra.mxu0 %v137
    %v201 = vpop.f32.mrf.mxu0
    %v202 = vadd.f32 %v58, %v201
    %203 = vmatmul.f32.gmra.mxu0 %v140
    %v204 = vpop.f32.mrf.mxu0
    %v205 = vadd.f32 %v63, %v204
    %206 = vmatmul.f32.gmra.mxu0 %v143
    %v207 = vpop.f32.mrf.mxu0
    %v208 = vadd.f32 %v68, %v207
    %209 = vmatmul.f32.gmra.mxu0 %v146
    %v210 = vpop.f32.mrf.mxu0
    %v211 = vadd.f32 %v73, %v210
    %212 = vmatmul.f32.gmra.mxu0 %v149
    %v213 = vpop.f32.mrf.mxu0
    %v214 = vadd.f32 %v78, %v213
    %215 = vmatmul.f32.gmra.mxu0 %v152
    %v216 = vpop.f32.mrf.mxu0
    %v217 = vadd.f32 %v83, %v216
    %218 = vmatmul.f32.gmra.mxu0 %v155
    %v219 = vpop.f32.mrf.mxu0
    %v220 = vadd.f32 %v88, %v219
    %221 = vmatmul.f32.gmra.mxu0 %v158
    %v222 = vpop.f32.mrf.mxu0
    %v223 = vadd.f32 %v93, %v222
    %224 = vmatmul.f32.gmra.mxu0 %v161
    %v225 = vpop.f32.mrf.mxu0
    %v226 = vadd.f32 %v98, %v225
    %227 = vmatmul.f32.gmra.mxu0 %v164
    %v228 = vpop.f32.mrf.mxu0
    %v229 = vadd.f32 %v103, %v228
    %230 = vmatmul.f32.gmra.mxu0 %v167
    %v231 = vpop.f32.mrf.mxu0
    %v232 = vadd.f32 %v108, %v231
    %233 = vmatmul.f32.gmra.mxu0 %v170
    %v234 = vpop.f32.mrf.mxu0
    %v235 = vadd.f32 %v113, %v234
    %236 = vmatmul.f32.gmra.mxu0 %v173
    %v237 = vpop.f32.mrf.mxu0
    %v238 = vadd.f32 %v118, %v237
    %239 = vmatmul.f32.gmra.mxu0 %v176
    %v240 = vpop.f32.mrf.mxu0
    %v241 = vadd.f32 %v123, %v240
    %242 = vmatmul.f32.gmra.mxu0 %v179
    %v243 = vpop.f32.mrf.mxu0
    %v244 = vadd.f32 %v128, %v243
    %245 = vmatmul.f32.gmra.mxu0 %v182
    %v246 = vpop.f32.mrf.mxu0
    %v247 = vadd.f32 %v133, %v246
    %248 = vdwg.mxu0
    %v249 = vmax.f32 %v202, 0.0
    %v250 = vmax.f32 %v205, 0.0
    %v251 = vmax.f32 %v208, 0.0
    %v252 = vmax.f32 %v211, 0.0
    %v253 = vmax.f32 %v214, 0.0
    %v254 = vmax.f32 %v217, 0.0
    %v255 = vmax.f32 %v220, 0.0
    %v256 = vmax.f32 %v223, 0.0
    %v257 = vmax.f32 %v226, 0.0
    %v258 = vmax.f32 %v229, 0.0
    %v259 = vmax.f32 %v232, 0.0
    %v260 = vmax.f32 %v235, 0.0
    %v261 = vmax.f32 %v238, 0.0
    %v262 = vmax.f32 %v241, 0.0
    %v263 = vmax.f32 %v244, 0.0
    %v264 = vmax.f32 %v247, 0.0
    %v265 = vld [vmem:[%s3] sm:$0xf]
    %v266 = vld [vmem:[%s4] sm:$0xf]
    %268 = vset.pattern.permute.xlu0 0
    %269 = vperm.xlu0 %268, %v266
    %v270 = vpop.permute.xlu0 %269
    %272 = vmatpush.msra.mxu0 %v264
    %273 = vmatpush.msra.mxu0 %v263
    %274 = vmatpush.msra.mxu0 %v262
    %275 = vmatpush.msra.mxu0 %v261
    %276 = vmatpush.msra.mxu0 %v260
    %277 = vmatpush.msra.mxu0 %v259
    %278 = vmatpush.msra.mxu0 %v258
    %279 = vmatpush.msra.mxu0 %v257
    %280 = vmatpush.msra.mxu0 %v256
    %281 = vmatpush.msra.mxu0 %v255
    %282 = vmatpush.msra.mxu0 %v254
    %283 = vmatpush.msra.mxu0 %v253
    %284 = vmatpush.msra.mxu0 %v252
    %285 = vmatpush.msra.mxu0 %v251
    %286 = vmatpush.msra.mxu0 %v250
    %287 = vmatpush.msra.mxu0 %v249
    %288 = vmatmul.f32.gmra.mxu0 %v265
    %v289 = vpop.f32.mrf.mxu0
    %v290 = vadd.f32 %v270, %v289
    %291 = vdwg.mxu0
    %vm292 = vcmask 60416
    %293 = vst.msk [vmem:[#allocation2] sm:$0xf] %vm292, %v290
    // Predicated region
    $region22: #{tpu_custom_call.1} parent=1 // pred_check
      _
    $region23: #{tpu_custom_call.1} parent=1 // pred_check_branch
      %295 = sbr.rel (0) target = $region25
    $region24: #{tpu_custom_call.1} parent=1 // pred_region
      %297 = vsyncadd [#allocation3], 0
      %s299 = sshll.u32 [#allocation2], 4
      %s300 = int_to_ptr.vmem [resolvable:$true] %s299
      %s301 = sshll.u32 %s5, 4
      %s302 = int_to_ptr.hbm [resolvable:$true] %s301
      %304 = dma.vmem_to_hbm [thread:$0]  %s300, 64, %s302, [#allocation3]
    $region25: #{tpu_custom_call.1} parent=1 // pred_fallthru
      _
    // Predicated region
    $region26: #{tpu_custom_call.1} parent=1 // pred_check
      _
    $region27: #{tpu_custom_call.1} parent=1 // pred_check_branch
      %306 = sbr.rel (0) target = $region29
    $region28: #{tpu_custom_call.1} parent=1 // pred_region
      %308 = dma.done [#allocation3], 64
    $region29: #{tpu_custom_call.1} parent=1 // pred_fallthru
      _
    %309 = vsyncpa [#allocation3], 1

</llo_original>
